<compile_context>
chip_gen: v5e
topology: v5e:2x2
jax: 0.10.0
libtpu: 0.0.40
codegen_flags: <defaults>
</compile_context>

<pallas_src>
import math
import jax
import jax.numpy as jnp
from jax.experimental import pallas as pl
from jax.experimental.pallas import tpu as pltpu

LANE = 128     # last-dim (lane) tile
SUBLANE = 8    # second-to-last (sublane) tile for f32


def _round_up(n, m):
    return ((n + m - 1) // m) * m


def simple_nn_kernel(x_ref, w1_ref, b1_ref, w2_ref, b2_ref, out_ref):
    # x_ref:  (Bp, Dp) f32   padded input
    # w1_ref: (Dp, Hp) f32   padded fc1 weight (in, hidden)
    # b1_ref: (1,  Hp) f32   padded fc1 bias
    # w2_ref: (1,  Hp) f32   padded fc2 weight row (transposed, O == 1)
    # b2_ref: (1,  1)  f32   fc2 bias scalar (SMEM)
    # out_ref:(Bp, 1)  f32
    # fc1 + ReLU: single MXU pass (f32), f32 epilogue on the VPU.
    z = jnp.dot(x_ref[...], w1_ref[...], preferred_element_type=jnp.float32)
    z = jnp.maximum(z + b1_ref[...], 0.0)

    # fc2 (O = 1): broadcast-multiply + lane reduce (VPU + XLU), all f32.
    y = jnp.sum(z * w2_ref[...], axis=-1, keepdims=True) + b2_ref[0, 0]

    # Sigmoid: exp and reciprocal both on the EUP slot.
    out_ref[...] = pl.reciprocal(1.0 + jnp.exp(-y), approx=True).astype(
        out_ref.dtype)


def prepare_params(w1, b1, w2, b2):
    """One-time padding/reshaping of parameters (hoisted out of the forward).

    w1: (D, H), b1: (H,), w2: (H, O=1), b2: (O=1,).
    Returns lane-aligned f32 arrays ready to feed straight into pallas_call.
    """
    D, H = w1.shape
    H2, O = w2.shape
    assert H2 == H and b1.shape == (H,) and b2.shape == (O,)
    assert O == 1, "fc2 reduce path is specialized for out_features == 1"

    Dp = _round_up(D, LANE)
    Hp = _round_up(H, LANE)

    w1_p = jnp.zeros((Dp, Hp), jnp.float32).at[:D, :H].set(
        w1.astype(jnp.float32))
    b1_p = jnp.zeros((1, Hp), jnp.float32).at[0, :H].set(
        b1.astype(jnp.float32))
    # fc2 weight stored as a single padded row: (1, Hp).
    w2_p = jnp.zeros((1, Hp), jnp.float32).at[0, :H].set(
        w2[:, 0].astype(jnp.float32))
    b2_p = b2.reshape(1, 1).astype(jnp.float32)
    return w1_p, b1_p, w2_p, b2_p


@jax.jit
def simple_nn_forward(x, params):
    """x: (B, D) f32; params: output of prepare_params. Returns (B, 1) f32."""
    w1_p, b1_p, w2_p, b2_p = params
    B, D = x.shape
    Dp = w1_p.shape[0]
    Bp = _round_up(B, SUBLANE)

    # Single fused pad (no scatter, no cast); zero padding is inert through
    # the matmul / bias / ReLU in the valid region.
    x_p = jnp.pad(x.astype(jnp.float32), ((0, Bp - B), (0, Dp - D)))

    out_p = pl.pallas_call(
        simple_nn_kernel,
        out_shape=jax.ShapeDtypeStruct((Bp, 1), jnp.float32),
        # No grid: one invocation, everything fully resident in VMEM/SMEM.
        in_specs=[
            pl.BlockSpec(memory_space=pltpu.MemorySpace.VMEM),   # x
            pl.BlockSpec(memory_space=pltpu.MemorySpace.VMEM),   # w1
            pl.BlockSpec(memory_space=pltpu.MemorySpace.VMEM),   # b1
            pl.BlockSpec(memory_space=pltpu.MemorySpace.VMEM),   # w2 row
            pl.BlockSpec(memory_space=pltpu.MemorySpace.SMEM),   # b2 scalar
        ],
        out_specs=pl.BlockSpec(memory_space=pltpu.MemorySpace.VMEM),
    )(x_p, w1_p, b1_p, w2_p, b2_p)

    return out_p[:B, :]


def init_params(key, in_features, hidden, out_features, dtype=jnp.float32):
    """Deterministic init mimicking nn.Linear: U(-1/sqrt(fan_in), 1/sqrt(fan_in))
    for both weights and biases. Weights stored as (in, out) so the forward
    computes x @ W + b with no transpose."""
    k1, k2, k3, k4 = jax.random.split(key, 4)
    bound1 = 1.0 / math.sqrt(in_features)
    bound2 = 1.0 / math.sqrt(hidden)
    w1 = jax.random.uniform(k1, (in_features, hidden), dtype, -bound1, bound1)
    b1 = jax.random.uniform(k2, (hidden,), dtype, -bound1, bound1)
    w2 = jax.random.uniform(k3, (hidden, out_features), dtype, -bound2, bound2)
    b2 = jax.random.uniform(k4, (out_features,), dtype, -bound2, bound2)
    return w1, b1, w2, b2


if __name__ == "__main__":
    key = jax.random.PRNGKey(0)
    k_x, k_p = jax.random.split(key)

    batch = 8
    in_features = 2     # fc1 = nn.Linear(2, 10)
    hidden = 10
    out_features = 1    # fc2 = nn.Linear(10, 1)

    x = jax.random.normal(k_x, (batch, in_features), dtype=jnp.float32)
    w1, b1, w2, b2 = init_params(k_p, in_features, hidden, out_features)

    # One-time parameter preparation (hoisted out of the per-call path).
    params = prepare_params(w1, b1, w2, b2)

    out = simple_nn_forward(x, params)
    out = jax.block_until_ready(out)
    assert out.shape == (batch, out_features)

    # Full-f32 reference (same precision as the PyTorch module).
    z_ref = jnp.maximum(x @ w1 + b1, 0.0)
    ref = 1.0 / (1.0 + jnp.exp(-(z_ref @ w2 + b2)))
    assert jnp.allclose(out, ref, atol=5e-3, rtol=5e-3), (out, ref)

    print("KERNEL_OK")
</pallas_src>

<mosaic_0001>
module attributes {stable_mosaic.version = 11 : i64} {
  func.func @simple_nn_kernel(%arg0: memref<8x128xf32, #tpu.memory_space<vmem>>, %arg1: memref<128x128xf32, #tpu.memory_space<vmem>>, %arg2: memref<1x128xf32, #tpu.memory_space<vmem>>, %arg3: memref<1x128xf32, #tpu.memory_space<vmem>>, %arg4: memref<1x1xf32, #tpu.memory_space<smem>>, %arg5: memref<8x1xf32, #tpu.memory_space<vmem>>) attributes {dimension_semantics = [], scalar_prefetch = 0 : i64, scratch_operands = 0 : i64, tpu.core_type = #tpu.core_type<tc>} {
    %c0 = arith.constant 0 : index
    %c0_0 = arith.constant 0 : index
    %0 = vector.load %arg0[%c0, %c0_0] : memref<8x128xf32, #tpu.memory_space<vmem>>, vector<8x128xf32>
    %c0_1 = arith.constant 0 : index
    %c0_2 = arith.constant 0 : index
    %1 = vector.load %arg1[%c0_1, %c0_2] : memref<128x128xf32, #tpu.memory_space<vmem>>, vector<128x128xf32>
    %cst = arith.constant dense<0.000000e+00> : vector<8x128xf32>
    %2 = tpu.matmul %0, %1, %cst {dimension_numbers = #tpu.dot_dimension_numbers<[1], [0], [0], [1], [0, 0, 1, 1], [], []>} : vector<8x128xf32>, vector<128x128xf32>, vector<8x128xf32> -> vector<8x128xf32>
    %c0_3 = arith.constant 0 : index
    %c0_4 = arith.constant 0 : index
    %3 = vector.load %arg2[%c0_3, %c0_4] : memref<1x128xf32, #tpu.memory_space<vmem>>, vector<1x128xf32>
    %4 = vector.broadcast %3 : vector<1x128xf32> to vector<8x128xf32>
    %5 = arith.addf %2, %4 : vector<8x128xf32>
    %cst_5 = arith.constant 0.000000e+00 : f32
    %6 = vector.broadcast %cst_5 : f32 to vector<8x128xf32>
    %7 = arith.maximumf %5, %6 : vector<8x128xf32>
    %c0_6 = arith.constant 0 : index
    %c0_7 = arith.constant 0 : index
    %8 = vector.load %arg3[%c0_6, %c0_7] : memref<1x128xf32, #tpu.memory_space<vmem>>, vector<1x128xf32>
    %9 = vector.broadcast %8 : vector<1x128xf32> to vector<8x128xf32>
    %10 = arith.mulf %7, %9 : vector<8x128xf32>
    %cst_8 = arith.constant dense<0.000000e+00> : vector<8xf32>
    %11 = vector.multi_reduction <add>, %10, %cst_8 [1] : vector<8x128xf32> to vector<8xf32>
    %12 = vector.shape_cast %11 : vector<8xf32> to vector<8x1xf32>
    %c0_9 = arith.constant 0 : index
    %c0_10 = arith.constant 0 : index
    %13 = memref.load %arg4[%c0_9, %c0_10] : memref<1x1xf32, #tpu.memory_space<smem>>
    %14 = vector.broadcast %13 : f32 to vector<8x1xf32>
    %15 = arith.addf %12, %14 : vector<8x1xf32>
    %cst_11 = arith.constant 0.000000e+00 : f32
    %16 = vector.broadcast %cst_11 : f32 to vector<8x1xf32>
    %17 = arith.subf %16, %15 : vector<8x1xf32>
    %18 = math.exp %17 : vector<8x1xf32>
    %cst_12 = arith.constant 1.000000e+00 : f32
    %19 = vector.broadcast %cst_12 : f32 to vector<8x1xf32>
    %20 = arith.addf %19, %18 : vector<8x1xf32>
    %21 = tpu.reciprocal %20 {approx = true} : vector<8x1xf32> -> vector<8x1xf32>
    %c0_13 = arith.constant 0 : index
    %c0_14 = arith.constant 0 : index
    %22 = vector.load %arg5[%c0_13, %c0_14] : memref<8x1xf32, #tpu.memory_space<vmem>>, vector<8x1xf32>
    tpu.vector_store %arg5[%c0_13, %c0_14], %21 {strides = array<i32>} : memref<8x1xf32, #tpu.memory_space<vmem>>, vector<8x1xf32>,
    return
  }
}

</mosaic_0001>

<llo_original>
// kernel: simple_nn_forward.1
$region0: #{simple_nn_forward.1}
  #allocation0 [shape = 'u32[]', space=smem, size = 0x4, offset = 0x4, fixed_abs, tag = 'smem constant byte address 0x4 - core index']
  #allocation1 [shape = 'u32[72,128]{1,0:T(1,128)}', space=vmem, size = 0x9000, scoped, tag = 'internal scratch']
  #allocation2 [shape = 'f32[1,1]{1,0:T(1,128)S(6)}', space=smem, size = 0x200, scoped, tag = 'scoped memory for simple_nn_forward.1']
  %s0 = inlined_call_operand.vmem [shape: f32[8,128], index: 0, kind: input, shape index: {}]
  %s1 = inlined_call_operand.hbm [shape: f32[128,128], index: 1, kind: input, shape index: {}]
  %s2 = inlined_call_operand.vmem [shape: f32[1,128], index: 2, kind: input, shape index: {}]
  %s3 = inlined_call_operand.vmem [shape: f32[1,128], index: 3, kind: input, shape index: {}]
  %s4 = inlined_call_operand.<no memory space> [shape: f32[1,1], index: 4, kind: input, shape index: {}]
  %s5 = inlined_call_operand.vmem [shape: f32[8,1], index: 5, kind: output, shape index: {}]
  %s6 = sld [smem:[#allocation0]]
  $region34: #{simple_nn_forward.1} parent=0
    _
  %s8 = ssub.s32 1, %s6
  %s9 = scalar_select 0, %s8, %s6
  %10 = sst [smem:[#allocation2]] %s4
  $region1: #{simple_nn_forward.1} parent=0
    #allocation3 [shape = 'u8[65536]{0}', space=vmem, size = 0x10000, scoped, tag = 'input window, operand 1, single buffered']
    #allocation4 [shape = 's32[1]{0}', space=sflag, size = 0x4, scoped, tag = 'scoped memory for simple_nn_forward.1']
    %11 = vsyncpa [#allocation4], 0
    // Predicated region
    $region2: #{simple_nn_forward.1} parent=1 // pred_check
      _
    $region3: #{simple_nn_forward.1} parent=1 // pred_check_branch
      %13 = sbr.rel (0) target = $region5
    $region4: #{simple_nn_forward.1} parent=1 // pred_region
      _
    $region5: #{simple_nn_forward.1} parent=1 // pred_fallthru
      _
    // Predicated region
    $region6: #{simple_nn_forward.1} parent=1 // pred_check
      _
    $region7: #{simple_nn_forward.1} parent=1 // pred_check_branch
      %15 = sbr.rel (0) target = $region9
    $region8: #{simple_nn_forward.1} parent=1 // pred_region
      %17 = vsyncadd [#allocation4], 0
      %s18 = sshll.u32 %s1, 4
      %s19 = int_to_ptr.hbm [resolvable:$true] %s18
      %s20 = sshll.u32 [#allocation3], 4
      %s21 = int_to_ptr.vmem [resolvable:$true] %s20
      %26 = dma.hbm_to_vmem [thread:$0]  %s19, 2048, %s21, [#allocation4], 128, 128, 8
    $region9: #{simple_nn_forward.1} parent=1 // pred_fallthru
      _
    // Predicated region
    $region10: #{simple_nn_forward.1} parent=1 // pred_check
      _
    $region11: #{simple_nn_forward.1} parent=1 // pred_check_branch
      %28 = sbr.rel (0) target = $region13
    $region12: #{simple_nn_forward.1} parent=1 // pred_region
      _
    $region13: #{simple_nn_forward.1} parent=1 // pred_fallthru
      _
    // Predicated region
    $region14: #{simple_nn_forward.1} parent=1 // pred_check
      _
    $region15: #{simple_nn_forward.1} parent=1 // pred_check_branch
      %30 = sbr.rel (0) target = $region17
    $region16: #{simple_nn_forward.1} parent=1 // pred_region
      _
    $region17: #{simple_nn_forward.1} parent=1 // pred_fallthru
      _
    // Predicated region
    $region18: #{simple_nn_forward.1} parent=1 // pred_check
      _
    $region19: #{simple_nn_forward.1} parent=1 // pred_check_branch
      %32 = sbr.rel (0) target = $region21
    $region20: #{simple_nn_forward.1} parent=1 // pred_region
      _
    $region21: #{simple_nn_forward.1} parent=1 // pred_fallthru
      _
    // Predicated region
    $region22: #{simple_nn_forward.1} parent=1 // pred_check
      _
    $region23: #{simple_nn_forward.1} parent=1 // pred_check_branch
      %34 = sbr.rel (0) target = $region25
    $region24: #{simple_nn_forward.1} parent=1 // pred_region
      %36 = dma.done [#allocation4], 2048
    $region25: #{simple_nn_forward.1} parent=1 // pred_fallthru
      _
    %v37 = vld [vmem:[%s0] sm:$0xff]
    %v38 = vld [vmem:[#allocation3] sm:$0xff]
    %v39 = vld [vmem:[#allocation3 + $0x8] sm:$0xff]
    %v40 = vld [vmem:[#allocation3 + $0x10] sm:$0xff]
    %v41 = vld [vmem:[#allocation3 + $0x18] sm:$0xff]
    %v42 = vld [vmem:[#allocation3 + $0x20] sm:$0xff]
    %v43 = vld [vmem:[#allocation3 + $0x28] sm:$0xff]
    %v44 = vld [vmem:[#allocation3 + $0x30] sm:$0xff]
    %v45 = vld [vmem:[#allocation3 + $0x38] sm:$0xff]
    %v46 = vld [vmem:[#allocation3 + $0x40] sm:$0xff]
    %v47 = vld [vmem:[#allocation3 + $0x48] sm:$0xff]
    %v48 = vld [vmem:[#allocation3 + $0x50] sm:$0xff]
    %v49 = vld [vmem:[#allocation3 + $0x58] sm:$0xff]
    %v50 = vld [vmem:[#allocation3 + $0x60] sm:$0xff]
    %v51 = vld [vmem:[#allocation3 + $0x68] sm:$0xff]
    %v52 = vld [vmem:[#allocation3 + $0x70] sm:$0xff]
    %v53 = vld [vmem:[#allocation3 + $0x78] sm:$0xff]
    %v54 = vld [vmem:[%s2] sm:$0x1]
    %v56 = vperm.slane %v54, 0
    %58 = vmatpush.msra.mxu0 %v53
    %59 = vmatpush.msra.mxu0 %v52
    %60 = vmatpush.msra.mxu0 %v51
    %61 = vmatpush.msra.mxu0 %v50
    %62 = vmatpush.msra.mxu0 %v49
    %63 = vmatpush.msra.mxu0 %v48
    %64 = vmatpush.msra.mxu0 %v47
    %65 = vmatpush.msra.mxu0 %v46
    %66 = vmatpush.msra.mxu0 %v45
    %67 = vmatpush.msra.mxu0 %v44
    %68 = vmatpush.msra.mxu0 %v43
    %69 = vmatpush.msra.mxu0 %v42
    %70 = vmatpush.msra.mxu0 %v41
    %71 = vmatpush.msra.mxu0 %v40
    %72 = vmatpush.msra.mxu0 %v39
    %73 = vmatpush.msra.mxu0 %v38
    %74 = vmatmul.f32.gmra.mxu0 %v37
    %v75 = vpop.f32.mrf.mxu0
    %v76 = vadd.f32 %v56, %v75
    %77 = vdwg.mxu0
    %v78 = vmax.f32 %v76, 0.0
    %v79 = vld [vmem:[%s3] sm:$0x1]
    %v81 = vperm.slane %v79, 0
    %v83 = vmul.f32 %v78, %v81
    %84 = vadd.xlane.f32.xlu0 %v83
    %v85 = vpop.xlane.xlu0 %84
    %s86 = sld [smem:[#allocation2]]
    %v87 = vstv %s86
    %v88 = vadd.f32 %v85, %v87
    %v89 = vsub.f32 0.0, %v88
    %v90 = vmul.f32 %v89, 1.442695
    %v91 = vpow.pop %v90
    %v92 = vadd.f32 %v91, 1.0
    %v93 = vrcp.pop %v92
    %vm94 = vcmask 7168
    %95 = vst.msk [vmem:[%s5] sm:$0xff] %vm94, %v93
    // Predicated region
    $region26: #{simple_nn_forward.1} parent=1 // pred_check
      _
    $region27: #{simple_nn_forward.1} parent=1 // pred_check_branch
      %97 = sbr.rel (0) target = $region29
    $region28: #{simple_nn_forward.1} parent=1 // pred_region
      _
    $region29: #{simple_nn_forward.1} parent=1 // pred_fallthru
      _
    // Predicated region
    $region30: #{simple_nn_forward.1} parent=1 // pred_check
      _
    $region31: #{simple_nn_forward.1} parent=1 // pred_check_branch
      %99 = sbr.rel (0) target = $region33
    $region32: #{simple_nn_forward.1} parent=1 // pred_region
      _
    $region33: #{simple_nn_forward.1} parent=1 // pred_fallthru
      _
    %100 = vsyncpa [#allocation4], 1

</llo_original>
